<compile_context>
chip_gen: v5e
topology: v5e:2x2
jax: 0.10.0
libtpu: 0.0.40
codegen_flags: <defaults>
</compile_context>

<pallas_src>
import jax
import jax.numpy as jnp
from jax import lax
from jax.experimental import pallas as pl
from jax.experimental.pallas import tpu as pltpu


def _pick_tile(length, preferred, granule):
    """Largest tile <= preferred that divides `length` and is a multiple of
    `granule`; falls back to the full length (always a valid block)."""
    if length <= preferred:
        return length
    t = (preferred // granule) * granule
    while t >= granule:
        if length % t == 0:
            return t
        t -= granule
    return length


def _make_flash_kernel(*, scale, has_bias):
    def kernel(*refs):
        if has_bias:
            q_ref, k_ref, v_ref, bias_ref, o_ref, m_sc, l_sc, acc_sc = refs
        else:
            q_ref, k_ref, v_ref, o_ref, m_sc, l_sc, acc_sc = refs
            bias_ref = None

        ki = pl.program_id(2)

        @pl.when(ki == 0)
        def _():
            m_sc[...] = jnp.full_like(m_sc, -jnp.inf)
            l_sc[...] = jnp.zeros_like(l_sc)
            acc_sc[...] = jnp.zeros_like(acc_sc)

        # Fold 1/temperature into the (H, tq, Dk) Q tile; matmul consumes the
        # native dtype and accumulates in f32 on the MXU.
        q = q_ref[...]
        q = q * jnp.asarray(scale, dtype=q.dtype)

        # hqd,hkd->hqk: contract the last dims directly -- no k.T relayout.
        s = lax.dot_general(
            q, k_ref[...],
            dimension_numbers=(((2,), (2,)), ((0,), (0,))),
            preferred_element_type=jnp.float32)                # (H, tq, tk)

        if bias_ref is not None:
            # bf16 additive bias (0 or -1e30), shared across all heads.
            s = s + bias_ref[...].astype(jnp.float32)[None, :, :]

        # Online softmax update; all statistics kept in f32.
        m_prev = m_sc[...]                                      # (H, tq, 1)
        m_new = jnp.maximum(m_prev, jnp.max(s, axis=-1, keepdims=True))
        alpha = jnp.exp(m_prev - m_new)
        p = jnp.exp(s - m_new)                                  # (H, tq, tk)
        l_sc[...] = alpha * l_sc[...] + jnp.sum(p, axis=-1, keepdims=True)
        acc_sc[...] = alpha * acc_sc[...] + lax.dot_general(
            p.astype(v_ref.dtype), v_ref[...],
            dimension_numbers=(((2,), (1,)), ((0,), (0,))),
            preferred_element_type=jnp.float32)                 # (H, tq, Dv)
        m_sc[...] = m_new

        @pl.when(ki == pl.num_programs(2) - 1)
        def _():
            # EUP reciprocal (frees the VALU slot); one Newton-Raphson step on
            # the tiny (H, tq, 1) tensor restores ~f32 accuracy for free.
            l = l_sc[...]
            r = pl.reciprocal(l, approx=True)
            r = r * (2.0 - l * r)
            o_ref[...] = (acc_sc[...] * r).astype(o_ref.dtype)

    return kernel


def scaled_dot_product_attention(q, k, v, temperature, mask=None, *,
                                 q_tile=128, kv_tile=512,
                                 vmem_limit_bytes=32 * 1024 * 1024):
    """Pallas implementation of ScaledDotProductAttention.forward (eval mode)."""
    B, H, Lq, Dk = q.shape
    Bk, Hk, Lk, Dk2 = k.shape
    Bv, Hv, Lkv, Dv = v.shape
    assert (Bk, Hk, Dk2) == (B, H, Dk)
    assert (Bv, Hv, Lkv) == (B, H, Lk)

    tq = _pick_tile(Lq, q_tile, 8)
    # 128-granule keeps the (tq, tk) mask/bias tile lane-aligned.
    tk = _pick_tile(Lk, kv_tile, 128)
    nq, nk = Lq // tq, Lk // tk

    scale = 1.0 / float(temperature)

    q_spec = pl.BlockSpec((pl.Squeezed(), H, tq, Dk),
                          lambda b, qi, ki: (b, 0, qi, 0))
    k_spec = pl.BlockSpec((pl.Squeezed(), H, tk, Dk),
                          lambda b, qi, ki: (b, 0, ki, 0))
    v_spec = pl.BlockSpec((pl.Squeezed(), H, tk, Dv),
                          lambda b, qi, ki: (b, 0, ki, 0))
    o_spec = pl.BlockSpec((pl.Squeezed(), H, tq, Dv),
                          lambda b, qi, ki: (b, 0, qi, 0))

    in_specs = [q_spec, k_spec, v_spec]
    inputs = [q, k, v]
    has_bias = mask is not None
    if has_bias:
        # bf16 additive bias: 0 where kept, -1e30 (finite!) where masked out.
        bias = jnp.where(mask, -1e30, 0.0).astype(jnp.bfloat16)
        in_specs.append(pl.BlockSpec((pl.Squeezed(), tq, tk),
                                     lambda b, qi, ki: (b, qi, ki)))
        inputs.append(bias)

    grid_spec = pltpu.PrefetchScalarGridSpec(
        num_scalar_prefetch=0,
        grid=(B, nq, nk),
        in_specs=in_specs,
        out_specs=o_spec,
        scratch_shapes=[
            pltpu.VMEM((H, tq, 1), jnp.float32),    # running max  m
            pltpu.VMEM((H, tq, 1), jnp.float32),    # running sum  l
            pltpu.VMEM((H, tq, Dv), jnp.float32),   # running out  acc
        ])

    kernel = _make_flash_kernel(scale=scale, has_bias=has_bias)

    return pl.pallas_call(
        kernel,
        out_shape=jax.ShapeDtypeStruct((B, H, Lq, Dv), q.dtype),
        grid_spec=grid_spec,
        compiler_params=pltpu.CompilerParams(
            dimension_semantics=("parallel", "parallel", "arbitrary"),
            vmem_limit_bytes=vmem_limit_bytes),
    )(*inputs)


def _reference(q, k, v, temperature, mask=None):
    attn = jnp.einsum("bhqd,bhkd->bhqk", q, k) / temperature
    if mask is not None:
        attn = jnp.where(mask[:, None, :, :], -jnp.inf, attn)
    attn = jax.nn.softmax(attn, axis=-1)
    return jnp.einsum("bhqk,bhkd->bhqd", attn, v)


if __name__ == "__main__":
    B, H, L, Dk, Dv = 2, 4, 8, 32, 32
    temperature = float(Dk) ** 0.5

    key = jax.random.PRNGKey(0)
    kq, kk, kv, km = jax.random.split(key, 4)
    q = jax.random.normal(kq, (B, H, L, Dk), dtype=jnp.float32)
    k = jax.random.normal(kk, (B, H, L, Dk), dtype=jnp.float32)
    v = jax.random.normal(kv, (B, H, L, Dv), dtype=jnp.float32)
    # mask: True = masked out; keep at least one unmasked key per query row
    mask = jax.random.bernoulli(km, p=0.3, shape=(B, L, L))
    mask = mask.at[:, :, 0].set(False)

    # no-mask path
    out = scaled_dot_product_attention(q, k, v, temperature)
    jax.block_until_ready(out)
    ref = _reference(q, k, v, temperature)
    assert jnp.allclose(out, ref, atol=1e-4, rtol=1e-4), "no-mask mismatch"

    # masked path
    out_m = scaled_dot_product_attention(q, k, v, temperature, mask=mask)
    jax.block_until_ready(out_m)
    ref_m = _reference(q, k, v, temperature, mask=mask)
    assert jnp.allclose(out_m, ref_m, atol=1e-4, rtol=1e-4), "masked mismatch"

    print("KERNEL_OK")
</pallas_src>

<mosaic_0001>
module attributes {stable_mosaic.version = 11 : i64} {
  func.func @kernel(%arg0: i32, %arg1: i32, %arg2: i32, %arg3: memref<1x4x8x32xf32, #tpu.memory_space<vmem>>, %arg4: memref<1x4x8x32xf32, #tpu.memory_space<vmem>>, %arg5: memref<1x4x8x32xf32, #tpu.memory_space<vmem>>, %arg6: memref<1x4x8x32xf32, #tpu.memory_space<vmem>>, %arg7: memref<4x8x1xf32, #tpu.memory_space<vmem>>, %arg8: memref<4x8x1xf32, #tpu.memory_space<vmem>>, %arg9: memref<4x8x32xf32, #tpu.memory_space<vmem>>) attributes {dimension_semantics = [#tpu.dimension_semantics<parallel>, #tpu.dimension_semantics<parallel>, #tpu.dimension_semantics<arbitrary>], iteration_bounds = array<i64: 2, 1, 1>, scalar_prefetch = 0 : i64, scratch_operands = 3 : i64, tpu.core_type = #tpu.core_type<tc>, window_params = [{transform_indices = @transform_0, window_bounds = array<i64: 1, 4, 8, 32>}, {transform_indices = @transform_1, window_bounds = array<i64: 1, 4, 8, 32>}, {transform_indices = @transform_2, window_bounds = array<i64: 1, 4, 8, 32>}, {transform_indices = @transform_3, window_bounds = array<i64: 1, 4, 8, 32>}]} {
    %c0_i32 = arith.constant 0 : i32
    %0 = arith.cmpi eq, %arg2, %c0_i32 : i32
    %1 = arith.extui %0 : i1 to i32
    %c0_i32_0 = arith.constant 0 : i32
    %2 = arith.cmpi ne, %1, %c0_i32_0 : i32
    scf.if %2 {
      %cst_36 = arith.constant 0xFF800000 : f32
      %37 = vector.broadcast %cst_36 : f32 to vector<4x8x1xf32>
      %c0_37 = arith.constant 0 : index
      %c0_38 = arith.constant 0 : index
      %c0_39 = arith.constant 0 : index
      %38 = vector.load %arg7[%c0_37, %c0_38, %c0_39] : memref<4x8x1xf32, #tpu.memory_space<vmem>>, vector<4x8x1xf32>
      tpu.vector_store %arg7[%c0_37, %c0_38, %c0_39], %37 {strides = array<i32>} : memref<4x8x1xf32, #tpu.memory_space<vmem>>, vector<4x8x1xf32>,
      %cst_40 = arith.constant 0.000000e+00 : f32
      %39 = vector.broadcast %cst_40 : f32 to vector<4x8x1xf32>
      %c0_41 = arith.constant 0 : index
      %c0_42 = arith.constant 0 : index
      %c0_43 = arith.constant 0 : index
      %40 = vector.load %arg8[%c0_41, %c0_42, %c0_43] : memref<4x8x1xf32, #tpu.memory_space<vmem>>, vector<4x8x1xf32>
      tpu.vector_store %arg8[%c0_41, %c0_42, %c0_43], %39 {strides = array<i32>} : memref<4x8x1xf32, #tpu.memory_space<vmem>>, vector<4x8x1xf32>,
      %cst_44 = arith.constant 0.000000e+00 : f32
      %41 = vector.broadcast %cst_44 : f32 to vector<4x8x32xf32>
      %c0_45 = arith.constant 0 : index
      %c0_46 = arith.constant 0 : index
      %c0_47 = arith.constant 0 : index
      %42 = vector.load %arg9[%c0_45, %c0_46, %c0_47] : memref<4x8x32xf32, #tpu.memory_space<vmem>>, vector<4x8x32xf32>
      tpu.vector_store %arg9[%c0_45, %c0_46, %c0_47], %41 {strides = array<i32>} : memref<4x8x32xf32, #tpu.memory_space<vmem>>, vector<4x8x32xf32>,
    } else {
    }
    %c0 = arith.constant 0 : index
    %c0_1 = arith.constant 0 : index
    %c0_2 = arith.constant 0 : index
    %c0_3 = arith.constant 0 : index
    %3 = vector.load %arg3[%c0, %c0_1, %c0_2, %c0_3] : memref<1x4x8x32xf32, #tpu.memory_space<vmem>>, vector<1x4x8x32xf32>
    %4 = vector.shape_cast %3 : vector<1x4x8x32xf32> to vector<4x8x32xf32>
    %cst = arith.constant 0.176776692 : f32
    %5 = vector.broadcast %cst : f32 to vector<4x8x32xf32>
    %6 = arith.mulf %4, %5 : vector<4x8x32xf32>
    %c0_4 = arith.constant 0 : index
    %c0_5 = arith.constant 0 : index
    %c0_6 = arith.constant 0 : index
    %c0_7 = arith.constant 0 : index
    %7 = vector.load %arg4[%c0_4, %c0_5, %c0_6, %c0_7] : memref<1x4x8x32xf32, #tpu.memory_space<vmem>>, vector<1x4x8x32xf32>
    %8 = vector.shape_cast %7 : vector<1x4x8x32xf32> to vector<4x8x32xf32>
    %cst_8 = arith.constant dense<0.000000e+00> : vector<4x8x8xf32>
    %9 = tpu.matmul %6, %8, %cst_8 {dimension_numbers = #tpu.dot_dimension_numbers<[2], [2], [1], [1], [0, 0, 0, 1, 1, 1], [0], [0]>} : vector<4x8x32xf32>, vector<4x8x32xf32>, vector<4x8x8xf32> -> vector<4x8x8xf32>
    %c0_9 = arith.constant 0 : index
    %c0_10 = arith.constant 0 : index
    %c0_11 = arith.constant 0 : index
    %10 = vector.load %arg7[%c0_9, %c0_10, %c0_11] : memref<4x8x1xf32, #tpu.memory_space<vmem>>, vector<4x8x1xf32>
    %cst_12 = arith.constant dense<0xFF800000> : vector<4x8xf32>
    %11 = vector.multi_reduction <maximumf>, %9, %cst_12 [2] : vector<4x8x8xf32> to vector<4x8xf32>
    %12 = vector.shape_cast %11 : vector<4x8xf32> to vector<4x8x1xf32>
    %13 = arith.maximumf %10, %12 : vector<4x8x1xf32>
    %14 = arith.subf %10, %13 : vector<4x8x1xf32>
    %15 = math.exp %14 : vector<4x8x1xf32>
    %16 = vector.broadcast %13 : vector<4x8x1xf32> to vector<4x8x8xf32>
    %17 = arith.subf %9, %16 : vector<4x8x8xf32>
    %18 = math.exp %17 : vector<4x8x8xf32>
    %c0_13 = arith.constant 0 : index
    %c0_14 = arith.constant 0 : index
    %c0_15 = arith.constant 0 : index
    %19 = vector.load %arg8[%c0_13, %c0_14, %c0_15] : memref<4x8x1xf32, #tpu.memory_space<vmem>>, vector<4x8x1xf32>
    %20 = arith.mulf %15, %19 : vector<4x8x1xf32>
    %cst_16 = arith.constant dense<0.000000e+00> : vector<4x8xf32>
    %21 = vector.multi_reduction <add>, %18, %cst_16 [2] : vector<4x8x8xf32> to vector<4x8xf32>
    %22 = vector.shape_cast %21 : vector<4x8xf32> to vector<4x8x1xf32>
    %23 = arith.addf %20, %22 : vector<4x8x1xf32>
    %c0_17 = arith.constant 0 : index
    %c0_18 = arith.constant 0 : index
    %c0_19 = arith.constant 0 : index
    %24 = vector.load %arg8[%c0_17, %c0_18, %c0_19] : memref<4x8x1xf32, #tpu.memory_space<vmem>>, vector<4x8x1xf32>
    tpu.vector_store %arg8[%c0_17, %c0_18, %c0_19], %23 {strides = array<i32>} : memref<4x8x1xf32, #tpu.memory_space<vmem>>, vector<4x8x1xf32>,
    %c0_20 = arith.constant 0 : index
    %c0_21 = arith.constant 0 : index
    %c0_22 = arith.constant 0 : index
    %25 = vector.load %arg9[%c0_20, %c0_21, %c0_22] : memref<4x8x32xf32, #tpu.memory_space<vmem>>, vector<4x8x32xf32>
    %26 = vector.broadcast %15 : vector<4x8x1xf32> to vector<4x8x32xf32>
    %27 = arith.mulf %26, %25 : vector<4x8x32xf32>
    %c0_23 = arith.constant 0 : index
    %c0_24 = arith.constant 0 : index
    %c0_25 = arith.constant 0 : index
    %c0_26 = arith.constant 0 : index
    %28 = vector.load %arg5[%c0_23, %c0_24, %c0_25, %c0_26] : memref<1x4x8x32xf32, #tpu.memory_space<vmem>>, vector<1x4x8x32xf32>
    %29 = vector.shape_cast %28 : vector<1x4x8x32xf32> to vector<4x8x32xf32>
    %cst_27 = arith.constant dense<0.000000e+00> : vector<4x8x32xf32>
    %30 = tpu.matmul %18, %29, %cst_27 {dimension_numbers = #tpu.dot_dimension_numbers<[2], [1], [1], [2], [0, 0, 0, 1, 1, 2], [0], [0]>} : vector<4x8x8xf32>, vector<4x8x32xf32>, vector<4x8x32xf32> -> vector<4x8x32xf32>
    %31 = arith.addf %27, %30 : vector<4x8x32xf32>
    %c0_28 = arith.constant 0 : index
    %c0_29 = arith.constant 0 : index
    %c0_30 = arith.constant 0 : index
    %32 = vector.load %arg9[%c0_28, %c0_29, %c0_30] : memref<4x8x32xf32, #tpu.memory_space<vmem>>, vector<4x8x32xf32>
    tpu.vector_store %arg9[%c0_28, %c0_29, %c0_30], %31 {strides = array<i32>} : memref<4x8x32xf32, #tpu.memory_space<vmem>>, vector<4x8x32xf32>,
    %c0_31 = arith.constant 0 : index
    %c0_32 = arith.constant 0 : index
    %c0_33 = arith.constant 0 : index
    %33 = vector.load %arg7[%c0_31, %c0_32, %c0_33] : memref<4x8x1xf32, #tpu.memory_space<vmem>>, vector<4x8x1xf32>
    tpu.vector_store %arg7[%c0_31, %c0_32, %c0_33], %13 {strides = array<i32>} : memref<4x8x1xf32, #tpu.memory_space<vmem>>, vector<4x8x1xf32>,
    %c0_i32_34 = arith.constant 0 : i32
    %34 = arith.cmpi eq, %arg2, %c0_i32_34 : i32
    %35 = arith.extui %34 : i1 to i32
    %c0_i32_35 = arith.constant 0 : i32
    %36 = arith.cmpi ne, %35, %c0_i32_35 : i32
    scf.if %36 {
      %c0_36 = arith.constant 0 : index
      %c0_37 = arith.constant 0 : index
      %c0_38 = arith.constant 0 : index
      %37 = vector.load %arg8[%c0_36, %c0_37, %c0_38] : memref<4x8x1xf32, #tpu.memory_space<vmem>>, vector<4x8x1xf32>
      %38 = tpu.reciprocal %37 {approx = true} : vector<4x8x1xf32> -> vector<4x8x1xf32>
      %39 = arith.mulf %37, %38 : vector<4x8x1xf32>
      %cst_39 = arith.constant 2.000000e+00 : f32
      %40 = vector.broadcast %cst_39 : f32 to vector<4x8x1xf32>
      %41 = arith.subf %40, %39 : vector<4x8x1xf32>
      %42 = arith.mulf %38, %41 : vector<4x8x1xf32>
      %c0_40 = arith.constant 0 : index
      %c0_41 = arith.constant 0 : index
      %c0_42 = arith.constant 0 : index
      %43 = vector.load %arg9[%c0_40, %c0_41, %c0_42] : memref<4x8x32xf32, #tpu.memory_space<vmem>>, vector<4x8x32xf32>
      %44 = vector.broadcast %42 : vector<4x8x1xf32> to vector<4x8x32xf32>
      %45 = arith.mulf %43, %44 : vector<4x8x32xf32>
      %c0_43 = arith.constant 0 : index
      %c0_44 = arith.constant 0 : index
      %c0_45 = arith.constant 0 : index
      %c0_46 = arith.constant 0 : index
      %46 = vector.load %arg6[%c0_43, %c0_44, %c0_45, %c0_46] : memref<1x4x8x32xf32, #tpu.memory_space<vmem>>, vector<1x4x8x32xf32>
      %47 = vector.shape_cast %46 : vector<1x4x8x32xf32> to vector<4x8x32xf32>
      %48 = vector.shape_cast %45 : vector<4x8x32xf32> to vector<1x4x8x32xf32>
      tpu.vector_store %arg6[%c0_43, %c0_44, %c0_45, %c0_46], %48 {strides = array<i32>} : memref<1x4x8x32xf32, #tpu.memory_space<vmem>>, vector<1x4x8x32xf32>,
    } else {
    }
    return
  }
  func.func @transform_0(%arg0: i32, %arg1: i32, %arg2: i32) -> (i32, i32, i32, i32) {
    %c0_i32 = arith.constant 0 : i32
    %c0_i32_0 = arith.constant 0 : i32
    %c0_i32_1 = arith.constant 0 : i32
    return %arg0, %c0_i32, %arg1, %c0_i32_0 : i32, i32, i32, i32
  }
  func.func @transform_1(%arg0: i32, %arg1: i32, %arg2: i32) -> (i32, i32, i32, i32) {
    %c0_i32 = arith.constant 0 : i32
    %c0_i32_0 = arith.constant 0 : i32
    %c0_i32_1 = arith.constant 0 : i32
    return %arg0, %c0_i32, %arg2, %c0_i32_0 : i32, i32, i32, i32
  }
  func.func @transform_2(%arg0: i32, %arg1: i32, %arg2: i32) -> (i32, i32, i32, i32) {
    %c0_i32 = arith.constant 0 : i32
    %c0_i32_0 = arith.constant 0 : i32
    %c0_i32_1 = arith.constant 0 : i32
    return %arg0, %c0_i32, %arg2, %c0_i32_0 : i32, i32, i32, i32
  }
  func.func @transform_3(%arg0: i32, %arg1: i32, %arg2: i32) -> (i32, i32, i32, i32) {
    %c0_i32 = arith.constant 0 : i32
    %c0_i32_0 = arith.constant 0 : i32
    %c0_i32_1 = arith.constant 0 : i32
    return %arg0, %c0_i32, %arg1, %c0_i32_0 : i32, i32, i32, i32
  }
}

</mosaic_0001>

<llo_original>
// kernel: tpu_custom_call.1
$region0: #{tpu_custom_call.1}
  #allocation0 [shape = 'u32[]', space=smem, size = 0x4, offset = 0x4, fixed_abs, tag = 'smem constant byte address 0x4 - core index']
  #allocation1 [shape = 'u32[72,128]{1,0:T(1,128)}', space=vmem, size = 0x9000, scoped, tag = 'internal scratch']
  #allocation2 [shape = 'f32[4,8,1]{2,1,0:T(8,128)}', space=vmem, size = 0x4000, scoped, tag = 'scratch operand']
  #allocation3 [shape = 'f32[4,8,1]{2,1,0:T(8,128)}', space=vmem, size = 0x4000, scoped, tag = 'scratch operand']
  #allocation4 [shape = 'f32[4,8,32]{2,1,0:T(8,128)}', space=vmem, size = 0x4000, scoped, tag = 'scratch operand']
  %s0 = inlined_call_operand.hbm [shape: f32[2,4,8,32], index: 0, kind: input, shape index: {}]
  %s1 = inlined_call_operand.hbm [shape: f32[2,4,8,32], index: 1, kind: input, shape index: {}]
  %s2 = inlined_call_operand.hbm [shape: f32[2,4,8,32], index: 2, kind: input, shape index: {}]
  %s3 = inlined_call_operand.hbm [shape: f32[2,4,8,32], index: 3, kind: output, shape index: {}]
  %s4 = sld [smem:[#allocation0]]
  $region65: #{tpu_custom_call.1} parent=0
    _
  %s6 = ssub.s32 1, %s4
  %s7 = scalar_select 0, %s6, %s4
  $region1: #{tpu_custom_call.1} parent=0
    #allocation5 [shape = 'u8[32768]{0}', space=vmem, size = 0x8000, scoped, tag = 'input window, operand 0']
    #allocation6 [shape = 's32[2]{0}', space=sflag, size = 0x8, scoped, tag = 'scoped memory for tpu_custom_call.1']
    #allocation7 [shape = 's32[2]{0}', space=sflag, size = 0x8, scoped, tag = 'scoped memory for tpu_custom_call.1']
    #allocation8 [shape = 'u8[32768]{0}', space=vmem, size = 0x8000, scoped, tag = 'input window, operand 1']
    #allocation9 [shape = 's32[2]{0}', space=sflag, size = 0x8, scoped, tag = 'scoped memory for tpu_custom_call.1']
    #allocation10 [shape = 'u8[32768]{0}', space=vmem, size = 0x8000, scoped, tag = 'input window, operand 2']
    #allocation11 [shape = 'u8[32768]{0}', space=vmem, size = 0x8000, scoped, tag = 'output window, operand 0']
    %8 = vsyncpa [#allocation6], 0
    %s9 = scalar_lea.sflag [#allocation6], 1
    %10 = vsyncpa %s9, 0
    %11 = vsyncpa [#allocation9], 0
    %s12 = scalar_lea.sflag [#allocation9], 1
    %13 = vsyncpa %s12, 0
    %14 = vsyncpa [#allocation7], 0
    %s15 = scalar_lea.sflag [#allocation7], 1
    %16 = vsyncpa %s15, 0
    loop: start=0, step=1, limit=4
    $region2: #{tpu_custom_call.1} parent=1 // loop_pre_header
      _
    $region3: #{tpu_custom_call.1} parent=1 // loop_header
      %s18 = sphi 0, %s22
      %p19 = scmp.ge.s32.totalorder %s18, 4
      %s25 = sphi 0, %s44
      %s26 = sphi 0, %s40
      %s27 = sphi 0, %s36
      %s28 = sphi 0, %s25
      %s29 = sphi 0, %s26
      %s30 = sphi 0, %s27
      %s31 = sphi 0, %s28
      %s32 = sphi 0, %s29
      %s33 = sphi 0, %s30
      %s49 = sphi 0, %s51
      %s52 = sphi 0, %s49
      %s53 = sphi 0, %s52
      %s69 = sphi 0, %s53
      %s77 = sphi 0, %s79
      %s80 = sphi 0, %s77
      %s81 = sphi 0, %s80
      %s97 = sphi 0, %s81
      %s105 = sphi 0, %s107
      %s108 = sphi 0, %s105
      %s109 = sphi 0, %s108
      %s125 = sphi 0, %s109
      %s133 = sphi 0, %s135
      %s136 = sphi 0, %s133
      %s137 = sphi 0, %s136
      %s153 = sphi 0, %s137
    $region4: #{tpu_custom_call.1} parent=1 // loop_header_branch
      %21 = sbr.rel (%p19) target = $region8
    $region5: #{tpu_custom_call.1} parent=1 // loop_body
      %s23 = ssub.s32 %s18, 1
      %s24 = ssub.s32 %s18, 2
      %s34 = sadd.s32 1, %s27
      %p35 = scmp.ge.s32.totalorder %s34, 1
      %s36 = scalar_select %p35, 0, %s34
      %s37 = sadd.s32 1, %s26
      %s38 = scalar_select %p35, %s37, %s26
      %p39 = scmp.ge.s32.totalorder %s38, 1
      %s40 = scalar_select %p39, 0, %s38
      %s41 = sadd.s32 1, %s25
      %s42 = scalar_select %p39, %s41, %s25
      %p43 = scmp.ge.s32.totalorder %s42, 2
      %s44 = scalar_select %p43, 0, %s42
      %s45 = ssub.s32 %s25, %s44
      %s46 = ssub.s32 %s26, %s40
      %s47 = sor.u32 %s45, %s46
      %p48 = scmp.eq.s32.totalorder %s47, 0
      %s50 = sadd.s32 %s49, 1
      %s51 = scalar_select %p48, %s49, %s50
      %p54 = pneg %p48
      %p55 = scmp.eq.s32.totalorder %s18, 1
      %p56 = por %p54, %p55
      %p57 = scmp.ne.s32.totalorder %s49, %s52
      %p58 = scmp.eq.s32.totalorder %s18, 0
      %p59 = por %p57, %p58
      %p60 = scmp.ne.s32.totalorder %s49, %s52
      %p61 = scmp.eq.s32.totalorder %s23, 1
      %p62 = por %p60, %p61
      %p63 = scmp.ne.s32.totalorder %s52, %s53
      %p64 = scmp.eq.s32.totalorder %s23, 0
      %p65 = por %p63, %p64
      %p66 = scmp.ne.s32.totalorder %s52, %s53
      %p67 = scmp.eq.s32.totalorder %s24, 1
      %p68 = por %p66, %p67
      %p70 = scmp.ne.s32.totalorder %s53, %s69
      %p71 = scmp.eq.s32.totalorder %s24, 0
      %p72 = por %p70, %p71
      %s73 = ssub.s32 %s25, %s44
      %s74 = ssub.s32 %s27, %s36
      %s75 = sor.u32 %s73, %s74
      %p76 = scmp.eq.s32.totalorder %s75, 0
      %s78 = sadd.s32 %s77, 1
      %s79 = scalar_select %p76, %s77, %s78
      %p82 = pneg %p76
      %p83 = scmp.eq.s32.totalorder %s18, 1
      %p84 = por %p82, %p83
      %p85 = scmp.ne.s32.totalorder %s77, %s80
      %p86 = scmp.eq.s32.totalorder %s18, 0
      %p87 = por %p85, %p86
      %p88 = scmp.ne.s32.totalorder %s77, %s80
      %p89 = scmp.eq.s32.totalorder %s23, 1
      %p90 = por %p88, %p89
      %p91 = scmp.ne.s32.totalorder %s80, %s81
      %p92 = scmp.eq.s32.totalorder %s23, 0
      %p93 = por %p91, %p92
      %p94 = scmp.ne.s32.totalorder %s80, %s81
      %p95 = scmp.eq.s32.totalorder %s24, 1
      %p96 = por %p94, %p95
      %p98 = scmp.ne.s32.totalorder %s81, %s97
      %p99 = scmp.eq.s32.totalorder %s24, 0
      %p100 = por %p98, %p99
      %s101 = ssub.s32 %s25, %s44
      %s102 = ssub.s32 %s27, %s36
      %s103 = sor.u32 %s101, %s102
      %p104 = scmp.eq.s32.totalorder %s103, 0
      %s106 = sadd.s32 %s105, 1
      %s107 = scalar_select %p104, %s105, %s106
      %p110 = pneg %p104
      %p111 = scmp.eq.s32.totalorder %s18, 1
      %p112 = por %p110, %p111
      %p113 = scmp.ne.s32.totalorder %s105, %s108
      %p114 = scmp.eq.s32.totalorder %s18, 0
      %p115 = por %p113, %p114
      %p116 = scmp.ne.s32.totalorder %s105, %s108
      %p117 = scmp.eq.s32.totalorder %s23, 1
      %p118 = por %p116, %p117
      %p119 = scmp.ne.s32.totalorder %s108, %s109
      %p120 = scmp.eq.s32.totalorder %s23, 0
      %p121 = por %p119, %p120
      %p122 = scmp.ne.s32.totalorder %s108, %s109
      %p123 = scmp.eq.s32.totalorder %s24, 1
      %p124 = por %p122, %p123
      %p126 = scmp.ne.s32.totalorder %s109, %s125
      %p127 = scmp.eq.s32.totalorder %s24, 0
      %p128 = por %p126, %p127
      %s129 = ssub.s32 %s25, %s44
      %s130 = ssub.s32 %s26, %s40
      %s131 = sor.u32 %s129, %s130
      %p132 = scmp.eq.s32.totalorder %s131, 0
      %s134 = sadd.s32 %s133, 1
      %s135 = scalar_select %p132, %s133, %s134
      %p138 = pneg %p132
      %p139 = scmp.eq.s32.totalorder %s18, 1
      %p140 = por %p138, %p139
      %p141 = scmp.ne.s32.totalorder %s133, %s136
      %p142 = scmp.eq.s32.totalorder %s18, 0
      %p143 = por %p141, %p142
      %p144 = scmp.ne.s32.totalorder %s133, %s136
      %p145 = scmp.eq.s32.totalorder %s23, 1
      %p146 = por %p144, %p145
      %p147 = scmp.ne.s32.totalorder %s136, %s137
      %p148 = scmp.eq.s32.totalorder %s23, 0
      %p149 = por %p147, %p148
      %p150 = scmp.ne.s32.totalorder %s136, %s137
      %p151 = scmp.eq.s32.totalorder %s24, 1
      %p152 = por %p150, %p151
      %p154 = scmp.ne.s32.totalorder %s137, %s153
      %p155 = scmp.eq.s32.totalorder %s24, 0
      %p156 = por %p154, %p155
      %p157 = scmp.le.s32.totalorder 1, %s18
      %p158 = scmp.lt.s32.totalorder %s18, 3
      %p159 = pnand %p157, %p158
      %p160 = pneg %p159
      // Predicated region
      $region9: #{tpu_custom_call.1} parent=5 // pred_check
        _
      $region10: #{tpu_custom_call.1} parent=5 // pred_check_branch
        %162 = sbr.rel (%p159) target = $region12
      $region11: #{tpu_custom_call.1} parent=5 // pred_region
        %s163 = ssub.s32 %s18, 1
      $region12: #{tpu_custom_call.1} parent=5 // pred_fallthru
        _
      %p164 = scmp.lt.s32.totalorder %s18, 2
      // Predicated region
      $region13: #{tpu_custom_call.1} parent=5 // pred_check
        %p165 = pneg %p164
      $region14: #{tpu_custom_call.1} parent=5 // pred_check_branch
        %167 = sbr.rel (%p165) target = $region16
      $region15: #{tpu_custom_call.1} parent=5 // pred_region
        // Predicated region
        $region17: #{tpu_custom_call.1} parent=15 // pred_check
          %p168 = pneg %p59
        $region18: #{tpu_custom_call.1} parent=15 // pred_check_branch
          %170 = sbr.rel (%p168) target = $region20
        $region19: #{tpu_custom_call.1} parent=15 // pred_region
          %s171 = sand.u32 %s49, 1
          %s172 = scalar_lea.sflag [#allocation6], %s171
          %s173 = sand.u32 %s49, 1
          %s174 = smul.addr %s173, 32
          %s175 = scalar_lea.vmem [#allocation5], %s174
          %177 = vsyncadd %s172, 0
          %s178 = smul.addr %s25, 4
          %s179 = sadd.s32 %s26, %s178
          %s180 = smul.addr %s179, 8
          %s181 = scalar_lea.hbm %s0, %s180
          %s182 = sshll.u32 %s181, 4
          %s183 = int_to_ptr.hbm [resolvable:$true] %s182
          %s184 = sshll.u32 %s175, 4
          %s185 = int_to_ptr.vmem [resolvable:$true] %s184
          %190 = dma.hbm_to_vmem [thread:$0]  %s183, 512, %s185, %s172, 128, 128, 8
        $region20: #{tpu_custom_call.1} parent=15 // pred_fallthru
          _
        // Predicated region
        $region21: #{tpu_custom_call.1} parent=15 // pred_check
          %p191 = pneg %p87
        $region22: #{tpu_custom_call.1} parent=15 // pred_check_branch
          %193 = sbr.rel (%p191) target = $region24
        $region23: #{tpu_custom_call.1} parent=15 // pred_region
          %s194 = sand.u32 %s18, 1
          %s195 = scalar_lea.sflag [#allocation9], %s194
          %s196 = sand.u32 %s77, 1
          %s197 = smul.addr %s196, 32
          %s198 = scalar_lea.vmem [#allocation8], %s197
          %200 = vsyncadd %s195, 0
          %s201 = smul.addr %s25, 4
          %s202 = sadd.s32 %s27, %s201
          %s203 = smul.addr %s202, 8
          %s204 = scalar_lea.hbm %s1, %s203
          %s205 = sshll.u32 %s204, 4
          %s206 = int_to_ptr.hbm [resolvable:$true] %s205
          %s207 = sshll.u32 %s198, 4
          %s208 = int_to_ptr.vmem [resolvable:$true] %s207
          %213 = dma.hbm_to_vmem [thread:$0]  %s206, 512, %s208, %s195, 128, 128, 8
        $region24: #{tpu_custom_call.1} parent=15 // pred_fallthru
          _
        // Predicated region
        $region25: #{tpu_custom_call.1} parent=15 // pred_check
          %p214 = pneg %p115
        $region26: #{tpu_custom_call.1} parent=15 // pred_check_branch
          %216 = sbr.rel (%p214) target = $region28
        $region27: #{tpu_custom_call.1} parent=15 // pred_region
          %s217 = sand.u32 %s18, 1
          %s218 = scalar_lea.sflag [#allocation9], %s217
          %s219 = sand.u32 %s105, 1
          %s220 = smul.addr %s219, 32
          %s221 = scalar_lea.vmem [#allocation10], %s220
          %223 = vsyncadd %s218, 0
          %s224 = smul.addr %s25, 4
          %s225 = sadd.s32 %s27, %s224
          %s226 = smul.addr %s225, 8
          %s227 = scalar_lea.hbm %s2, %s226
          %s228 = sshll.u32 %s227, 4
          %s229 = int_to_ptr.hbm [resolvable:$true] %s228
          %s230 = sshll.u32 %s221, 4
          %s231 = int_to_ptr.vmem [resolvable:$true] %s230
          %236 = dma.hbm_to_vmem [thread:$0]  %s229, 512, %s231, %s218, 128, 128, 8
        $region28: #{tpu_custom_call.1} parent=15 // pred_fallthru
          _
      $region16: #{tpu_custom_call.1} parent=5 // pred_fallthru
        _
      %p237 = scmp.le.s32.totalorder 1, %s18
      %p238 = scmp.lt.s32.totalorder %s18, 3
      %p239 = pnand %p237, %p238
      %p240 = pneg %p239
      // Predicated region
      $region29: #{tpu_custom_call.1} parent=5 // pred_check
        _
      $region30: #{tpu_custom_call.1} parent=5 // pred_check_branch
        %242 = sbr.rel (%p239) target = $region32
      $region31: #{tpu_custom_call.1} parent=5 // pred_region
        %s243 = ssub.s32 %s18, 1
        %s244 = sand.u32 %s52, 1
        %s245 = scalar_lea.sflag [#allocation6], %s244
        %s246 = sand.u32 %s52, 1
        %s247 = smul.addr %s246, 32
        %s248 = scalar_lea.vmem [#allocation5], %s247
        // Predicated region
        $region33: #{tpu_custom_call.1} parent=31 // pred_check
          %p249 = pneg %p65
        $region34: #{tpu_custom_call.1} parent=31 // pred_check_branch
          %251 = sbr.rel (%p249) target = $region36
        $region35: #{tpu_custom_call.1} parent=31 // pred_region
          %253 = dma.done %s245, 512
        $region36: #{tpu_custom_call.1} parent=31 // pred_fallthru
          _
        %s254 = sand.u32 %s23, 1
        %s255 = scalar_lea.sflag [#allocation9], %s254
        %s256 = sand.u32 %s80, 1
        %s257 = smul.addr %s256, 32
        %s258 = scalar_lea.vmem [#allocation8], %s257
        // Predicated region
        $region37: #{tpu_custom_call.1} parent=31 // pred_check
          %p259 = pneg %p93
        $region38: #{tpu_custom_call.1} parent=31 // pred_check_branch
          %261 = sbr.rel (%p259) target = $region40
        $region39: #{tpu_custom_call.1} parent=31 // pred_region
          %263 = dma.done %s255, 512
        $region40: #{tpu_custom_call.1} parent=31 // pred_fallthru
          _
        %s264 = sand.u32 %s23, 1
        %s265 = scalar_lea.sflag [#allocation9], %s264
        %s266 = sand.u32 %s108, 1
        %s267 = smul.addr %s266, 32
        %s268 = scalar_lea.vmem [#allocation10], %s267
        // Predicated region
        $region41: #{tpu_custom_call.1} parent=31 // pred_check
          %p269 = pneg %p121
        $region42: #{tpu_custom_call.1} parent=31 // pred_check_branch
          %271 = sbr.rel (%p269) target = $region44
        $region43: #{tpu_custom_call.1} parent=31 // pred_region
          %273 = dma.done %s265, 512
        $region44: #{tpu_custom_call.1} parent=31 // pred_fallthru
          _
        %s274 = sand.u32 %s52, 1
        %s275 = scalar_lea.sflag [#allocation6], %s274
        %s276 = sand.u32 %s52, 1
        %s277 = smul.addr %s276, 32
        %s278 = scalar_lea.vmem [#allocation5], %s277
        %p279 = pneg %p65
        %p280 = pneg %p62
        %s281 = sand.u32 %s23, 1
        %s282 = scalar_lea.sflag [#allocation9], %s281
        %s283 = sand.u32 %s80, 1
        %s284 = smul.addr %s283, 32
        %s285 = scalar_lea.vmem [#allocation8], %s284
        %p286 = pneg %p93
        %p287 = pneg %p90
        %s288 = sand.u32 %s23, 1
        %s289 = scalar_lea.sflag [#allocation9], %s288
        %s290 = sand.u32 %s108, 1
        %s291 = smul.addr %s290, 32
        %s292 = scalar_lea.vmem [#allocation10], %s291
        %p293 = pneg %p121
        %p294 = pneg %p118
        %p295 = pneg %p149
        %p296 = pneg %p146
        %s297 = sand.u32 %s136, 1
        %s298 = scalar_lea.sflag [#allocation7], %s297
        %s299 = sand.u32 %s136, 1
        %s300 = smul.addr %s299, 32
        %s301 = scalar_lea.vmem [#allocation11], %s300
        %p302 = scmp.eq.s32.totalorder %s30, 0
        // Predicated region
        $region45: #{tpu_custom_call.1} parent=31 // pred_check
          %p303 = pneg %p302
        $region46: #{tpu_custom_call.1} parent=31 // pred_check_branch
          %305 = sbr.rel (%p303) target = $region48
        $region47: #{tpu_custom_call.1} parent=31 // pred_region
          %vm306 = vcmask 7168
          %307 = vst.msk [vmem:[#allocation2] sm:$0xff] %vm306, -inf
          %308 = vst.msk [vmem:[#allocation2 + $0x8] sm:$0xff] %vm306, -inf
          %309 = vst.msk [vmem:[#allocation2 + $0x10] sm:$0xff] %vm306, -inf
          %310 = vst.msk [vmem:[#allocation2 + $0x18] sm:$0xff] %vm306, -inf
          %311 = vst.msk [vmem:[#allocation3] sm:$0xff] %vm306, 0.0
          %312 = vst.msk [vmem:[#allocation3 + $0x8] sm:$0xff] %vm306, 0.0
          %313 = vst.msk [vmem:[#allocation3 + $0x10] sm:$0xff] %vm306, 0.0
          %314 = vst.msk [vmem:[#allocation3 + $0x18] sm:$0xff] %vm306, 0.0
          %vm315 = vcmask 261120
          %316 = vst.msk [vmem:[#allocation4] sm:$0xff] %vm315, 0.0
          %317 = vst.msk [vmem:[#allocation4 + $0x8] sm:$0xff] %vm315, 0.0
          %318 = vst.msk [vmem:[#allocation4 + $0x10] sm:$0xff] %vm315, 0.0
          %319 = vst.msk [vmem:[#allocation4 + $0x18] sm:$0xff] %vm315, 0.0
        $region48: #{tpu_custom_call.1} parent=31 // pred_fallthru
          _
        %v320 = vld [vmem:[%s248] sm:$0xff]
        %v321 = vld [vmem:[%s248 + $0x8] sm:$0xff]
        %v322 = vld [vmem:[%s248 + $0x10] sm:$0xff]
        %v323 = vld [vmem:[%s248 + $0x18] sm:$0xff]
        %v324 = vmul.f32 %v320, 0.17677669
        %v325 = vmul.f32 %v321, 0.17677669
        %v326 = vmul.f32 %v322, 0.17677669
        %v327 = vmul.f32 %v323, 0.17677669
        %v328 = vld [vmem:[%s258] sm:$0xff]
        %v329 = vld [vmem:[%s258 + $0x8] sm:$0xff]
        %v330 = vld [vmem:[%s258 + $0x10] sm:$0xff]
        %v331 = vld [vmem:[%s258 + $0x18] sm:$0xff]
        %vm332 = vcmask 261120
        %v334 = vsel %vm332, %v324, 0
        %v337 = vsel %vm332, %v328, 0
        %339 = vmatpush.xpose.msra.mxu0 0.0
        %340 = vmatpush.xpose.msra.mxu0 0.0
        %341 = vmatpush.xpose.msra.mxu0 0.0
        %342 = vmatpush.xpose.msra.mxu0 0.0
        %343 = vmatpush.xpose.msra.mxu0 0.0
        %344 = vmatpush.xpose.msra.mxu0 0.0
        %345 = vmatpush.xpose.msra.mxu0 0.0
        %346 = vmatpush.xpose.msra.mxu0 0.0
        %347 = vmatpush.xpose.msra.mxu0 0.0
        %348 = vmatpush.xpose.msra.mxu0 0.0
        %349 = vmatpush.xpose.msra.mxu0 0.0
        %350 = vmatpush.xpose.msra.mxu0 0.0
        %351 = vmatpush.xpose.msra.mxu0 0.0
        %352 = vmatpush.xpose.msra.mxu0 0.0
        %353 = vmatpush.xpose.msra.mxu0 0.0
        %354 = vmatpush.xpose.msra.mxu0 %v337
        %355 = vmatmul.f32.gmra.mxu0 %v334
        %v356 = vpop.f32.mrf.mxu0
        %v357 = vadd.f32 0.0, %v356
        %358 = vdwg.mxu0
        %v360 = vsel %vm332, %v325, 0
        %v363 = vsel %vm332, %v329, 0
        %365 = vmatpush.xpose.msra.mxu0 0.0
        %366 = vmatpush.xpose.msra.mxu0 0.0
        %367 = vmatpush.xpose.msra.mxu0 0.0
        %368 = vmatpush.xpose.msra.mxu0 0.0
        %369 = vmatpush.xpose.msra.mxu0 0.0
        %370 = vmatpush.xpose.msra.mxu0 0.0
        %371 = vmatpush.xpose.msra.mxu0 0.0
        %372 = vmatpush.xpose.msra.mxu0 0.0
        %373 = vmatpush.xpose.msra.mxu0 0.0
        %374 = vmatpush.xpose.msra.mxu0 0.0
        %375 = vmatpush.xpose.msra.mxu0 0.0
        %376 = vmatpush.xpose.msra.mxu0 0.0
        %377 = vmatpush.xpose.msra.mxu0 0.0
        %378 = vmatpush.xpose.msra.mxu0 0.0
        %379 = vmatpush.xpose.msra.mxu0 0.0
        %380 = vmatpush.xpose.msra.mxu0 %v363
        %381 = vmatmul.f32.gmra.mxu0 %v360
        %v382 = vpop.f32.mrf.mxu0
        %v383 = vadd.f32 0.0, %v382
        %384 = vdwg.mxu0
        %v386 = vsel %vm332, %v326, 0
        %v389 = vsel %vm332, %v330, 0
        %391 = vmatpush.xpose.msra.mxu0 0.0
        %392 = vmatpush.xpose.msra.mxu0 0.0
        %393 = vmatpush.xpose.msra.mxu0 0.0
        %394 = vmatpush.xpose.msra.mxu0 0.0
        %395 = vmatpush.xpose.msra.mxu0 0.0
        %396 = vmatpush.xpose.msra.mxu0 0.0
        %397 = vmatpush.xpose.msra.mxu0 0.0
        %398 = vmatpush.xpose.msra.mxu0 0.0
        %399 = vmatpush.xpose.msra.mxu0 0.0
        %400 = vmatpush.xpose.msra.mxu0 0.0
        %401 = vmatpush.xpose.msra.mxu0 0.0
        %402 = vmatpush.xpose.msra.mxu0 0.0
        %403 = vmatpush.xpose.msra.mxu0 0.0
        %404 = vmatpush.xpose.msra.mxu0 0.0
        %405 = vmatpush.xpose.msra.mxu0 0.0
        %406 = vmatpush.xpose.msra.mxu0 %v389
        %407 = vmatmul.f32.gmra.mxu0 %v386
        %v408 = vpop.f32.mrf.mxu0
        %v409 = vadd.f32 0.0, %v408
        %410 = vdwg.mxu0
        %v412 = vsel %vm332, %v327, 0
        %v415 = vsel %vm332, %v331, 0
        %417 = vmatpush.xpose.msra.mxu0 0.0
        %418 = vmatpush.xpose.msra.mxu0 0.0
        %419 = vmatpush.xpose.msra.mxu0 0.0
        %420 = vmatpush.xpose.msra.mxu0 0.0
        %421 = vmatpush.xpose.msra.mxu0 0.0
        %422 = vmatpush.xpose.msra.mxu0 0.0
        %423 = vmatpush.xpose.msra.mxu0 0.0
        %424 = vmatpush.xpose.msra.mxu0 0.0
        %425 = vmatpush.xpose.msra.mxu0 0.0
        %426 = vmatpush.xpose.msra.mxu0 0.0
        %427 = vmatpush.xpose.msra.mxu0 0.0
        %428 = vmatpush.xpose.msra.mxu0 0.0
        %429 = vmatpush.xpose.msra.mxu0 0.0
        %430 = vmatpush.xpose.msra.mxu0 0.0
        %431 = vmatpush.xpose.msra.mxu0 0.0
        %432 = vmatpush.xpose.msra.mxu0 %v415
        %433 = vmatmul.f32.gmra.mxu0 %v412
        %v434 = vpop.f32.mrf.mxu0
        %v435 = vadd.f32 0.0, %v434
        %436 = vdwg.mxu0
        %v437 = vld [vmem:[#allocation2] sm:$0xff]
        %v438 = vld [vmem:[#allocation2 + $0x8] sm:$0xff]
        %v439 = vld [vmem:[#allocation2 + $0x10] sm:$0xff]
        %v440 = vld [vmem:[#allocation2 + $0x18] sm:$0xff]
        %vm441 = vcmask 64512
        %v442 = vsel %vm441, %v357, -inf
        %443 = vmax.xlane.f32.xlu0 %v442
        %v444 = vpop.xlane.xlu0 %443
        %v445 = vsel %vm441, %v383, -inf
        %446 = vmax.xlane.f32.xlu0 %v445
        %v447 = vpop.xlane.xlu0 %446
        %v448 = vsel %vm441, %v409, -inf
        %449 = vmax.xlane.f32.xlu0 %v448
        %v450 = vpop.xlane.xlu0 %449
        %v451 = vsel %vm441, %v435, -inf
        %452 = vmax.xlane.f32.xlu0 %v451
        %v453 = vpop.xlane.xlu0 %452
        %v454 = vmax.f32 %v437, %v444
        %v455 = vmax.f32 %v438, %v447
        %v456 = vmax.f32 %v439, %v450
        %v457 = vmax.f32 %v440, %v453
        %v458 = vsub.f32 %v437, %v454
        %v459 = vsub.f32 %v438, %v455
        %v460 = vsub.f32 %v439, %v456
        %v461 = vsub.f32 %v440, %v457
        %v462 = vmul.f32 %v458, 1.442695
        %v463 = vpow.pop %v462
        %v464 = vmul.f32 %v459, 1.442695
        %v465 = vpow.pop %v464
        %v466 = vmul.f32 %v460, 1.442695
        %v467 = vpow.pop %v466
        %v468 = vmul.f32 %v461, 1.442695
        %v469 = vpow.pop %v468
        %471 = vset.pattern.permute.xlu0 0
        %472 = vperm.xlu0 %471, %v454
        %v473 = vpop.permute.xlu0 %472
        %476 = vset.pattern.permute.xlu0 0
        %477 = vperm.xlu0 %476, %v455
        %v478 = vpop.permute.xlu0 %477
        %481 = vset.pattern.permute.xlu0 0
        %482 = vperm.xlu0 %481, %v456
        %v483 = vpop.permute.xlu0 %482
        %486 = vset.pattern.permute.xlu0 0
        %487 = vperm.xlu0 %486, %v457
        %v488 = vpop.permute.xlu0 %487
        %v490 = vsub.f32 %v357, %v473
        %v491 = vsub.f32 %v383, %v478
        %v492 = vsub.f32 %v409, %v483
        %v493 = vsub.f32 %v435, %v488
        %v494 = vmul.f32 %v490, 1.442695
        %v495 = vpow.pop %v494
        %v496 = vmul.f32 %v491, 1.442695
        %v497 = vpow.pop %v496
        %v498 = vmul.f32 %v492, 1.442695
        %v499 = vpow.pop %v498
        %v500 = vmul.f32 %v493, 1.442695
        %v501 = vpow.pop %v500
        %v502 = vld [vmem:[#allocation3] sm:$0xff]
        %v503 = vld [vmem:[#allocation3 + $0x8] sm:$0xff]
        %v504 = vld [vmem:[#allocation3 + $0x10] sm:$0xff]
        %v505 = vld [vmem:[#allocation3 + $0x18] sm:$0xff]
        %v506 = vmul.f32 %v463, %v502
        %v507 = vmul.f32 %v465, %v503
        %v508 = vmul.f32 %v467, %v504
        %v509 = vmul.f32 %v469, %v505
        %v510 = vsel %vm441, %v495, 0.0
        %511 = vadd.xlane.f32.xlu0 %v510
        %v512 = vpop.xlane.xlu0 %511
        %v513 = vsel %vm441, %v497, 0.0
        %514 = vadd.xlane.f32.xlu0 %v513
        %v515 = vpop.xlane.xlu0 %514
        %v516 = vsel %vm441, %v499, 0.0
        %517 = vadd.xlane.f32.xlu0 %v516
        %v518 = vpop.xlane.xlu0 %517
        %v519 = vsel %vm441, %v501, 0.0
        %520 = vadd.xlane.f32.xlu0 %v519
        %v521 = vpop.xlane.xlu0 %520
        %v522 = vadd.f32 %v506, %v512
        %v523 = vadd.f32 %v507, %v515
        %v524 = vadd.f32 %v508, %v518
        %v525 = vadd.f32 %v509, %v521
        %vm526 = vcmask 7168
        %527 = vst.msk [vmem:[#allocation3] sm:$0xff] %vm526, %v522
        %528 = vst.msk [vmem:[#allocation3 + $0x8] sm:$0xff] %vm526, %v523
        %529 = vst.msk [vmem:[#allocation3 + $0x10] sm:$0xff] %vm526, %v524
        %530 = vst.msk [vmem:[#allocation3 + $0x18] sm:$0xff] %vm526, %v525
        %v531 = vld [vmem:[#allocation4] sm:$0xff]
        %v532 = vld [vmem:[#allocation4 + $0x8] sm:$0xff]
        %v533 = vld [vmem:[#allocation4 + $0x10] sm:$0xff]
        %v534 = vld [vmem:[#allocation4 + $0x18] sm:$0xff]
        %536 = vset.pattern.permute.xlu0 0
        %537 = vperm.xlu0 %536, %v463
        %v538 = vpop.permute.xlu0 %537
        %541 = vset.pattern.permute.xlu0 0
        %542 = vperm.xlu0 %541, %v465
        %v543 = vpop.permute.xlu0 %542
        %546 = vset.pattern.permute.xlu0 0
        %547 = vperm.xlu0 %546, %v467
        %v548 = vpop.permute.xlu0 %547
        %551 = vset.pattern.permute.xlu0 0
        %552 = vperm.xlu0 %551, %v469
        %v553 = vpop.permute.xlu0 %552
        %v555 = vmul.f32 %v538, %v531
        %v556 = vmul.f32 %v543, %v532
        %v557 = vmul.f32 %v548, %v533
        %v558 = vmul.f32 %v553, %v534
        %v559 = vld [vmem:[%s268] sm:$0xff]
        %v560 = vld [vmem:[%s268 + $0x8] sm:$0xff]
        %v561 = vld [vmem:[%s268 + $0x10] sm:$0xff]
        %v562 = vld [vmem:[%s268 + $0x18] sm:$0xff]
        %v564 = vsel %vm441, %v495, 0
        %566 = vmatpush.msra.mxu0 0.0
        %567 = vmatpush.msra.mxu0 0.0
        %568 = vmatpush.msra.mxu0 0.0
        %569 = vmatpush.msra.mxu0 0.0
        %570 = vmatpush.msra.mxu0 0.0
        %571 = vmatpush.msra.mxu0 0.0
        %572 = vmatpush.msra.mxu0 0.0
        %573 = vmatpush.msra.mxu0 0.0
        %574 = vmatpush.msra.mxu0 0.0
        %575 = vmatpush.msra.mxu0 0.0
        %576 = vmatpush.msra.mxu0 0.0
        %577 = vmatpush.msra.mxu0 0.0
        %578 = vmatpush.msra.mxu0 0.0
        %579 = vmatpush.msra.mxu0 0.0
        %580 = vmatpush.msra.mxu0 0.0
        %581 = vmatpush.msra.mxu0 %v559
        %582 = vmatmul.f32.gmra.mxu0 %v564
        %v583 = vpop.f32.mrf.mxu0
        %v584 = vadd.f32 0.0, %v583
        %585 = vdwg.mxu0
        %v587 = vsel %vm441, %v497, 0
        %589 = vmatpush.msra.mxu0 0.0
        %590 = vmatpush.msra.mxu0 0.0
        %591 = vmatpush.msra.mxu0 0.0
        %592 = vmatpush.msra.mxu0 0.0
        %593 = vmatpush.msra.mxu0 0.0
        %594 = vmatpush.msra.mxu0 0.0
        %595 = vmatpush.msra.mxu0 0.0
        %596 = vmatpush.msra.mxu0 0.0
        %597 = vmatpush.msra.mxu0 0.0
        %598 = vmatpush.msra.mxu0 0.0
        %599 = vmatpush.msra.mxu0 0.0
        %600 = vmatpush.msra.mxu0 0.0
        %601 = vmatpush.msra.mxu0 0.0
        %602 = vmatpush.msra.mxu0 0.0
        %603 = vmatpush.msra.mxu0 0.0
        %604 = vmatpush.msra.mxu0 %v560
        %605 = vmatmul.f32.gmra.mxu0 %v587
        %v606 = vpop.f32.mrf.mxu0
        %v607 = vadd.f32 0.0, %v606
        %608 = vdwg.mxu0
        %v610 = vsel %vm441, %v499, 0
        %612 = vmatpush.msra.mxu0 0.0
        %613 = vmatpush.msra.mxu0 0.0
        %614 = vmatpush.msra.mxu0 0.0
        %615 = vmatpush.msra.mxu0 0.0
        %616 = vmatpush.msra.mxu0 0.0
        %617 = vmatpush.msra.mxu0 0.0
        %618 = vmatpush.msra.mxu0 0.0
        %619 = vmatpush.msra.mxu0 0.0
        %620 = vmatpush.msra.mxu0 0.0
        %621 = vmatpush.msra.mxu0 0.0
        %622 = vmatpush.msra.mxu0 0.0
        %623 = vmatpush.msra.mxu0 0.0
        %624 = vmatpush.msra.mxu0 0.0
        %625 = vmatpush.msra.mxu0 0.0
        %626 = vmatpush.msra.mxu0 0.0
        %627 = vmatpush.msra.mxu0 %v561
        %628 = vmatmul.f32.gmra.mxu0 %v610
        %v629 = vpop.f32.mrf.mxu0
        %v630 = vadd.f32 0.0, %v629
        %631 = vdwg.mxu0
        %v633 = vsel %vm441, %v501, 0
        %635 = vmatpush.msra.mxu0 0.0
        %636 = vmatpush.msra.mxu0 0.0
        %637 = vmatpush.msra.mxu0 0.0
        %638 = vmatpush.msra.mxu0 0.0
        %639 = vmatpush.msra.mxu0 0.0
        %640 = vmatpush.msra.mxu0 0.0
        %641 = vmatpush.msra.mxu0 0.0
        %642 = vmatpush.msra.mxu0 0.0
        %643 = vmatpush.msra.mxu0 0.0
        %644 = vmatpush.msra.mxu0 0.0
        %645 = vmatpush.msra.mxu0 0.0
        %646 = vmatpush.msra.mxu0 0.0
        %647 = vmatpush.msra.mxu0 0.0
        %648 = vmatpush.msra.mxu0 0.0
        %649 = vmatpush.msra.mxu0 0.0
        %650 = vmatpush.msra.mxu0 %v562
        %651 = vmatmul.f32.gmra.mxu0 %v633
        %v652 = vpop.f32.mrf.mxu0
        %v653 = vadd.f32 0.0, %v652
        %654 = vdwg.mxu0
        %v655 = vadd.f32 %v555, %v584
        %v656 = vadd.f32 %v556, %v607
        %v657 = vadd.f32 %v557, %v630
        %v658 = vadd.f32 %v558, %v653
        %659 = vst.msk [vmem:[#allocation4] sm:$0xff] %vm332, %v655
        %660 = vst.msk [vmem:[#allocation4 + $0x8] sm:$0xff] %vm332, %v656
        %661 = vst.msk [vmem:[#allocation4 + $0x10] sm:$0xff] %vm332, %v657
        %662 = vst.msk [vmem:[#allocation4 + $0x18] sm:$0xff] %vm332, %v658
        %663 = vst.msk [vmem:[#allocation2] sm:$0xff] %vm526, %v454
        %664 = vst.msk [vmem:[#allocation2 + $0x8] sm:$0xff] %vm526, %v455
        %665 = vst.msk [vmem:[#allocation2 + $0x10] sm:$0xff] %vm526, %v456
        %666 = vst.msk [vmem:[#allocation2 + $0x18] sm:$0xff] %vm526, %v457
        // Predicated region
        $region49: #{tpu_custom_call.1} parent=31 // pred_check
          %p667 = pneg %p302
        $region50: #{tpu_custom_call.1} parent=31 // pred_check_branch
          %669 = sbr.rel (%p667) target = $region52
        $region51: #{tpu_custom_call.1} parent=31 // pred_region
          %v670 = vld [vmem:[#allocation3] sm:$0xff]
          %v671 = vld [vmem:[#allocation3 + $0x8] sm:$0xff]
          %v672 = vld [vmem:[#allocation3 + $0x10] sm:$0xff]
          %v673 = vld [vmem:[#allocation3 + $0x18] sm:$0xff]
          %v674 = vrcp.pop %v670
          %v675 = vrcp.pop %v671
          %v676 = vrcp.pop %v672
          %v677 = vrcp.pop %v673
          %v678 = vmul.f32 %v670, %v674
          %v679 = vmul.f32 %v671, %v675
          %v680 = vmul.f32 %v672, %v676
          %v681 = vmul.f32 %v673, %v677
          %v682 = vsub.f32 2.0, %v678
          %v683 = vsub.f32 2.0, %v679
          %v684 = vsub.f32 2.0, %v680
          %v685 = vsub.f32 2.0, %v681
          %v686 = vmul.f32 %v674, %v682
          %v687 = vmul.f32 %v675, %v683
          %v688 = vmul.f32 %v676, %v684
          %v689 = vmul.f32 %v677, %v685
          %v690 = vld [vmem:[#allocation4] sm:$0xff]
          %v691 = vld [vmem:[#allocation4 + $0x8] sm:$0xff]
          %v692 = vld [vmem:[#allocation4 + $0x10] sm:$0xff]
          %v693 = vld [vmem:[#allocation4 + $0x18] sm:$0xff]
          %695 = vset.pattern.permute.xlu0 0
          %696 = vperm.xlu0 %695, %v686
          %v697 = vpop.permute.xlu0 %696
          %700 = vset.pattern.permute.xlu0 0
          %701 = vperm.xlu0 %700, %v687
          %v702 = vpop.permute.xlu0 %701
          %705 = vset.pattern.permute.xlu0 0
          %706 = vperm.xlu0 %705, %v688
          %v707 = vpop.permute.xlu0 %706
          %710 = vset.pattern.permute.xlu0 0
          %711 = vperm.xlu0 %710, %v689
          %v712 = vpop.permute.xlu0 %711
          %v714 = vmul.f32 %v690, %v697
          %v715 = vmul.f32 %v691, %v702
          %v716 = vmul.f32 %v692, %v707
          %v717 = vmul.f32 %v693, %v712
          %718 = vst.msk [vmem:[%s301] sm:$0xff] %vm332, %v714
          %719 = vst.msk [vmem:[%s301 + $0x8] sm:$0xff] %vm332, %v715
          %720 = vst.msk [vmem:[%s301 + $0x10] sm:$0xff] %vm332, %v716
          %721 = vst.msk [vmem:[%s301 + $0x18] sm:$0xff] %vm332, %v717
        $region52: #{tpu_custom_call.1} parent=31 // pred_fallthru
          _
        %s722 = sand.u32 %s136, 1
        %s723 = scalar_lea.sflag [#allocation7], %s722
        %s724 = sand.u32 %s136, 1
        %s725 = smul.addr %s724, 32
        %s726 = scalar_lea.vmem [#allocation11], %s725
        // Predicated region
        $region53: #{tpu_custom_call.1} parent=31 // pred_check
          %p727 = pneg %p146
        $region54: #{tpu_custom_call.1} parent=31 // pred_check_branch
          %729 = sbr.rel (%p727) target = $region56
        $region55: #{tpu_custom_call.1} parent=31 // pred_region
          %731 = vsyncadd %s723, 0
          %s732 = smul.addr %s28, 4
          %s733 = sadd.s32 %s29, %s732
          %s734 = smul.addr %s733, 8
          %s735 = scalar_lea.hbm %s3, %s734
          %s736 = sshll.u32 %s726, 4
          %s737 = int_to_ptr.vmem [resolvable:$true] %s736
          %s738 = sshll.u32 %s735, 4
          %s739 = int_to_ptr.hbm [resolvable:$true] %s738
          %744 = dma.vmem_to_hbm [thread:$0]  %s737, 512, %s739, %s723, 128, 128, 8
        $region56: #{tpu_custom_call.1} parent=31 // pred_fallthru
          _
      $region32: #{tpu_custom_call.1} parent=5 // pred_fallthru
        _
      %p745 = scmp.le.s32.totalorder 2, %s18
      // Predicated region
      $region57: #{tpu_custom_call.1} parent=5 // pred_check
        %p746 = pneg %p745
      $region58: #{tpu_custom_call.1} parent=5 // pred_check_branch
        %748 = sbr.rel (%p746) target = $region60
      $region59: #{tpu_custom_call.1} parent=5 // pred_region
        %s749 = ssub.s32 %s18, 2
        // Predicated region
        $region61: #{tpu_custom_call.1} parent=59 // pred_check
          %p750 = pneg %p152
        $region62: #{tpu_custom_call.1} parent=59 // pred_check_branch
          %752 = sbr.rel (%p750) target = $region64
        $region63: #{tpu_custom_call.1} parent=59 // pred_region
          %s753 = sand.u32 %s137, 1
          %s754 = scalar_lea.sflag [#allocation7], %s753
          %s755 = sand.u32 %s137, 1
          %s756 = smul.addr %s755, 32
          %s757 = scalar_lea.vmem [#allocation11], %s756
          %759 = dma.done %s754, 512
        $region64: #{tpu_custom_call.1} parent=59 // pred_fallthru
          _
      $region60: #{tpu_custom_call.1} parent=5 // pred_fallthru
        _
    $region6: #{tpu_custom_call.1} parent=1 // loop_footer
      %s22 = sadd.s32 1, %s18
    $region7: #{tpu_custom_call.1} parent=1 // loop_footer_branch
      %17 = sbr.rel target = $region3
    $region8: #{tpu_custom_call.1} parent=1 // loop_exit
      _
    %760 = vsyncpa [#allocation6], 1
    %s761 = scalar_lea.sflag [#allocation6], 1
    %762 = vsyncpa %s761, 1
    %763 = vsyncpa [#allocation9], 1
    %s764 = scalar_lea.sflag [#allocation9], 1
    %765 = vsyncpa %s764, 1
    %766 = vsyncpa [#allocation7], 1
    %s767 = scalar_lea.sflag [#allocation7], 1
    %768 = vsyncpa %s767, 1

</llo_original>
